<compile_context>
chip_gen: v7x
topology: tpu7x:2x2x1
jax: 0.10.0
libtpu: 0.0.40
codegen_flags: <defaults>
</compile_context>

<pallas_src>
import jax
import jax.numpy as jnp
import numpy as np
from jax import lax
from jax.experimental import pallas as pl
from jax.experimental.pallas import tpu as pltpu


def _spectral_conv_kernel(x_ref, u_ref, filt_ref, bias_ref, o_ref, acc_ref):
    # x:    (N, tf)   U: (N, tb)   filt: (tf, tb)   bias/out: (tf, N)
    # acc:  (tf, 1)   -- per-feature scalar accumulator across b-blocks.
    kb = pl.program_id(1)
    nb = pl.num_programs(1)

    @pl.when(kb == 0)
    def _init():
        acc_ref[...] = jnp.zeros_like(acc_ref)

    # Z[i, b] = sum_a x[a, i] * U[a, b]  -> (tf, tb); contraction over dim 0 of
    # both operands feeds the MXU directly (no explicit transposes / XLU work),
    # and the wide N/tb dim lands on the 128-lane axis.
    z = lax.dot_general(
        x_ref[...], u_ref[...],
        dimension_numbers=(((0,), (0,)), ((), ())),
        preferred_element_type=jnp.float32)

    # W[i, b] = U[0, b] * filters[i, b].  Row 0 of the U block is the global
    # row 0 because the row axis of U is never tiled.
    w = filt_ref[...] * u_ref[0:1, :]

    # Partial scalar per feature over this b-chunk (lane reduce, XLU slot).
    acc_ref[...] += jnp.sum(w * z, axis=-1, keepdims=True)

    @pl.when(kb == nb - 1)
    def _finalize():
        # Broadcast the per-feature scalar along the sample (lane) axis and
        # add bias[i, :].  Output is lane-dense: last dim = N.
        o_ref[...] = (acc_ref[...] + bias_ref[...]).astype(o_ref.dtype)


def _pick_block(dim, target, align=128):
    """Largest multiple of `align` that divides `dim` and is <= target.

    Falls back to the full extent when no aligned divisor exists (Pallas
    allows block == full dim regardless of (8, 128) alignment)."""
    if dim % align != 0:
        return dim
    cand = (min(target, dim) // align) * align
    while cand >= align:
        if dim % cand == 0:
            return cand
        cand -= align
    return dim


def spectral_graph_conv(x, U, filters, bias, *, block_b=None, block_f=None):
    N, F = x.shape
    assert U.shape == (N, N)
    assert filters.shape == (F, N)
    assert bias.shape == (F, N)

    x = x.astype(jnp.float32)
    U = U.astype(jnp.float32)
    filters = filters.astype(jnp.float32)
    bias = bias.astype(jnp.float32)

    if block_b is None:
        # Keep 2 (double-buffer) x N x tb x 4B per U tile comfortably inside
        # the scoped VMEM budget on all of v5e / v6e / v7x.
        target_b = max(128, min(512, ((1 << 21) // max(N, 1)) // 128 * 128))
        block_b = _pick_block(N, target_b, 128)
    if block_f is None:
        # F is the lane dim of x, so feature blocks must be 128-aligned (or
        # the full extent, which is what the small demo uses).
        block_f = _pick_block(F, 128, 128)

    nf = F // block_f
    nb = N // block_b
    grid = (nf, nb)

    cost = pl.CostEstimate(
        flops=2 * N * N * F + 4 * N * F,
        transcendentals=0,
        bytes_accessed=4 * (N * F + N * N + 3 * F * N),
    )

    out_fn = pl.pallas_call(
        _spectral_conv_kernel,
        out_shape=jax.ShapeDtypeStruct((F, N), jnp.float32),
        grid=grid,
        in_specs=[
            pl.BlockSpec((N, block_f), lambda fi, kb: (0, fi)),        # x
            pl.BlockSpec((N, block_b), lambda fi, kb: (0, kb)),        # U
            pl.BlockSpec((block_f, block_b), lambda fi, kb: (fi, kb)),  # filters
            pl.BlockSpec((block_f, N), lambda fi, kb: (fi, 0)),        # bias
        ],
        out_specs=pl.BlockSpec((block_f, N), lambda fi, kb: (fi, 0)),
        scratch_shapes=[pltpu.VMEM((block_f, 1), jnp.float32)],
        compiler_params=pltpu.CompilerParams(
            dimension_semantics=("parallel", "arbitrary"),
            vmem_limit_bytes=48 * 1024 * 1024),
        cost_estimate=cost,
    )(x, U, filters, bias)

    # The module returns (Nsamples, Nfeatures); the kernel emits lane-dense
    # (F, N).  The transpose happens in XLA outside the kernel.
    return out_fn.T


def _reference(x, U, filters, bias):
    x = np.asarray(x, np.float64)
    U = np.asarray(U, np.float64)
    filters = np.asarray(filters, np.float64)
    bias = np.asarray(bias, np.float64)
    N, F = x.shape
    out = np.zeros((N, F), np.float64)
    for i in range(F):
        y = U.T @ x[:, i:i + 1]                       # (N, 1)
        f = U @ np.diag(filters[i, :])                # (N, N)
        s_conv = f @ y                                # (N, 1)
        out[:, i] = s_conv[0, 0]                      # diag of (N,1) -> scalar
        out[:, i] += bias[i, :]
    return out


if __name__ == "__main__":
    num_vertices = 16   # Nsamples
    num_features = 8    # Nfeatures

    key = jax.random.PRNGKey(0)
    k_x, k_u, k_f, k_b = jax.random.split(key, 4)

    # Deterministic parameter init mirroring reset_parameters():
    # uniform(-stdv, stdv) with stdv = 1 / sqrt(num_vertices).
    stdv = 1.0 / np.sqrt(num_vertices)
    filters = jax.random.uniform(
        k_f, (num_features, num_vertices), jnp.float32, -stdv, stdv)
    bias = jax.random.uniform(
        k_b, (num_features, num_vertices), jnp.float32, -stdv, stdv)

    x = jax.random.normal(k_x, (num_vertices, num_features), jnp.float32)
    U = jax.random.normal(k_u, (num_vertices, num_vertices), jnp.float32)

    out = spectral_graph_conv(x, U, filters, bias)
    out = jax.block_until_ready(out)

    ref = _reference(x, U, filters, bias)
    np.testing.assert_allclose(np.asarray(out), ref, rtol=1e-4, atol=1e-4)

    print("KERNEL_OK")
</pallas_src>

<mosaic_0001>
module attributes {stable_mosaic.version = 11 : i64} {
  func.func @_spectral_conv_kernel(%arg0: i32, %arg1: i32, %arg2: memref<16x8xf32, #tpu.memory_space<vmem>>, %arg3: memref<16x16xf32, #tpu.memory_space<vmem>>, %arg4: memref<8x16xf32, #tpu.memory_space<vmem>>, %arg5: memref<8x16xf32, #tpu.memory_space<vmem>>, %arg6: memref<8x16xf32, #tpu.memory_space<vmem>>, %arg7: memref<8x1xf32, #tpu.memory_space<vmem>>) attributes {dimension_semantics = [#tpu.dimension_semantics<parallel>, #tpu.dimension_semantics<arbitrary>], iteration_bounds = array<i64: 1, 1>, scalar_prefetch = 0 : i64, scratch_operands = 1 : i64, tpu.core_type = #tpu.core_type<tc>, window_params = [{transform_indices = @transform_0, window_bounds = array<i64: 16, 8>}, {transform_indices = @transform_1, window_bounds = array<i64: 16, 16>}, {transform_indices = @transform_2, window_bounds = array<i64: 8, 16>}, {transform_indices = @transform_3, window_bounds = array<i64: 8, 16>}, {transform_indices = @transform_4, window_bounds = array<i64: 8, 16>}]} {
    %c0_i32 = arith.constant 0 : i32
    %0 = arith.cmpi eq, %arg1, %c0_i32 : i32
    %1 = arith.extui %0 : i1 to i32
    %c0_i32_0 = arith.constant 0 : i32
    %2 = arith.cmpi ne, %1, %c0_i32_0 : i32
    scf.if %2 {
      %cst_15 = arith.constant 0.000000e+00 : f32
      %19 = vector.broadcast %cst_15 : f32 to vector<8x1xf32>
      %c0_16 = arith.constant 0 : index
      %c0_17 = arith.constant 0 : index
      %20 = vector.load %arg7[%c0_16, %c0_17] : memref<8x1xf32, #tpu.memory_space<vmem>>, vector<8x1xf32>
      tpu.vector_store %arg7[%c0_16, %c0_17], %19 {strides = array<i32>} : memref<8x1xf32, #tpu.memory_space<vmem>>, vector<8x1xf32>,
    } else {
    }
    %c0 = arith.constant 0 : index
    %c0_1 = arith.constant 0 : index
    %3 = vector.load %arg2[%c0, %c0_1] : memref<16x8xf32, #tpu.memory_space<vmem>>, vector<16x8xf32>
    %c0_2 = arith.constant 0 : index
    %c0_3 = arith.constant 0 : index
    %4 = vector.load %arg3[%c0_2, %c0_3] : memref<16x16xf32, #tpu.memory_space<vmem>>, vector<16x16xf32>
    %cst = arith.constant dense<0.000000e+00> : vector<8x16xf32>
    %5 = tpu.matmul %3, %4, %cst {dimension_numbers = #tpu.dot_dimension_numbers<[0], [0], [1], [1], [0, 1, 1, 1], [], []>} : vector<16x8xf32>, vector<16x16xf32>, vector<8x16xf32> -> vector<8x16xf32>
    %c0_4 = arith.constant 0 : index
    %c0_5 = arith.constant 0 : index
    %6 = vector.load %arg4[%c0_4, %c0_5] : memref<8x16xf32, #tpu.memory_space<vmem>>, vector<8x16xf32>
    %c0_6 = arith.constant 0 : index
    %c0_7 = arith.constant 0 : index
    %7 = vector.load %arg3[%c0_6, %c0_7] : memref<16x16xf32, #tpu.memory_space<vmem>>, vector<1x16xf32>
    %8 = vector.broadcast %7 : vector<1x16xf32> to vector<8x16xf32>
    %9 = arith.mulf %6, %8 : vector<8x16xf32>
    %c0_8 = arith.constant 0 : index
    %c0_9 = arith.constant 0 : index
    %10 = vector.load %arg7[%c0_8, %c0_9] : memref<8x1xf32, #tpu.memory_space<vmem>>, vector<8x1xf32>
    %11 = arith.mulf %9, %5 : vector<8x16xf32>
    %cst_10 = arith.constant dense<0.000000e+00> : vector<8xf32>
    %12 = vector.multi_reduction <add>, %11, %cst_10 [1] : vector<8x16xf32> to vector<8xf32>
    %13 = vector.shape_cast %12 : vector<8xf32> to vector<8x1xf32>
    %14 = arith.addf %10, %13 : vector<8x1xf32>
    %c0_11 = arith.constant 0 : index
    %c0_12 = arith.constant 0 : index
    %15 = vector.load %arg7[%c0_11, %c0_12] : memref<8x1xf32, #tpu.memory_space<vmem>>, vector<8x1xf32>
    tpu.vector_store %arg7[%c0_11, %c0_12], %14 {strides = array<i32>} : memref<8x1xf32, #tpu.memory_space<vmem>>, vector<8x1xf32>,
    %c0_i32_13 = arith.constant 0 : i32
    %16 = arith.cmpi eq, %arg1, %c0_i32_13 : i32
    %17 = arith.extui %16 : i1 to i32
    %c0_i32_14 = arith.constant 0 : i32
    %18 = arith.cmpi ne, %17, %c0_i32_14 : i32
    scf.if %18 {
      %c0_15 = arith.constant 0 : index
      %c0_16 = arith.constant 0 : index
      %19 = vector.load %arg7[%c0_15, %c0_16] : memref<8x1xf32, #tpu.memory_space<vmem>>, vector<8x1xf32>
      %c0_17 = arith.constant 0 : index
      %c0_18 = arith.constant 0 : index
      %20 = vector.load %arg5[%c0_17, %c0_18] : memref<8x16xf32, #tpu.memory_space<vmem>>, vector<8x16xf32>
      %21 = vector.broadcast %19 : vector<8x1xf32> to vector<8x16xf32>
      %22 = arith.addf %21, %20 : vector<8x16xf32>
      %c0_19 = arith.constant 0 : index
      %c0_20 = arith.constant 0 : index
      %23 = vector.load %arg6[%c0_19, %c0_20] : memref<8x16xf32, #tpu.memory_space<vmem>>, vector<8x16xf32>
      tpu.vector_store %arg6[%c0_19, %c0_20], %22 {strides = array<i32>} : memref<8x16xf32, #tpu.memory_space<vmem>>, vector<8x16xf32>,
    } else {
    }
    return
  }
  func.func @transform_0(%arg0: i32, %arg1: i32) -> (i32, i32) {
    %c0_i32 = arith.constant 0 : i32
    %c0_i32_0 = arith.constant 0 : i32
    return %c0_i32, %arg0 : i32, i32
  }
  func.func @transform_1(%arg0: i32, %arg1: i32) -> (i32, i32) {
    %c0_i32 = arith.constant 0 : i32
    %c0_i32_0 = arith.constant 0 : i32
    return %c0_i32, %arg1 : i32, i32
  }
  func.func @transform_2(%arg0: i32, %arg1: i32) -> (i32, i32) {
    %c0_i32 = arith.constant 0 : i32
    return %arg0, %arg1 : i32, i32
  }
  func.func @transform_3(%arg0: i32, %arg1: i32) -> (i32, i32) {
    %c0_i32 = arith.constant 0 : i32
    %c0_i32_0 = arith.constant 0 : i32
    return %arg0, %c0_i32 : i32, i32
  }
  func.func @transform_4(%arg0: i32, %arg1: i32) -> (i32, i32) {
    %c0_i32 = arith.constant 0 : i32
    %c0_i32_0 = arith.constant 0 : i32
    return %arg0, %c0_i32 : i32, i32
  }
}

</mosaic_0001>

<llo_original>
// kernel: tpu_custom_call.1
$region0: #{tpu_custom_call.1}
  #allocation0 [shape = 'u32[]', space=smem, size = 0x4, offset = 0x4, fixed_abs, tag = 'smem constant byte address 0x4 - core index']
  #allocation1 [shape = 'u32[144,128]{1,0:T(1,128)}', space=vmem, size = 0x12000, scoped, tag = 'internal scratch']
  #allocation2 [shape = 'f32[8,1]{1,0:T(8,128)}', space=vmem, size = 0x1000, scoped, tag = 'scratch operand']
  %s0 = inlined_call_operand.vmem [shape: f32[16,8], index: 0, kind: input, shape index: {}]
  %s1 = inlined_call_operand.vmem [shape: f32[16,16], index: 1, kind: input, shape index: {}]
  %s2 = inlined_call_operand.vmem [shape: f32[8,16], index: 2, kind: input, shape index: {}]
  %s3 = inlined_call_operand.vmem [shape: f32[8,16], index: 3, kind: input, shape index: {}]
  %s4 = inlined_call_operand.hbm [shape: f32[8,16], index: 4, kind: output, shape index: {}]
  %s5 = sld [smem:[#allocation0]]
  $region34: #{tpu_custom_call.1} parent=0
    _
  %s7 = ssub.s32 1, %s5
  %s8 = scalar_select 0, %s7, %s5
  $region1: #{tpu_custom_call.1} parent=0
    #allocation3 [shape = 'u8[4096]{0}', space=vmem, size = 0x1000, scoped, tag = 'output window, operand 0, single buffered']
    #allocation4 [shape = 's32[1]{0}', space=sflag, size = 0x4, scoped, tag = 'scoped memory for tpu_custom_call.1']
    %9 = vsyncpa [#allocation4], 0
    // Predicated region
    $region2: #{tpu_custom_call.1} parent=1 // pred_check
      _
    $region3: #{tpu_custom_call.1} parent=1 // pred_check_branch
      %11 = sbr.rel (0) target = $region5
    $region4: #{tpu_custom_call.1} parent=1 // pred_region
      _
    $region5: #{tpu_custom_call.1} parent=1 // pred_fallthru
      _
    // Predicated region
    $region6: #{tpu_custom_call.1} parent=1 // pred_check
      _
    $region7: #{tpu_custom_call.1} parent=1 // pred_check_branch
      %13 = sbr.rel (0) target = $region9
    $region8: #{tpu_custom_call.1} parent=1 // pred_region
      _
    $region9: #{tpu_custom_call.1} parent=1 // pred_fallthru
      _
    // Predicated region
    $region10: #{tpu_custom_call.1} parent=1 // pred_check
      _
    $region11: #{tpu_custom_call.1} parent=1 // pred_check_branch
      %15 = sbr.rel (0) target = $region13
    $region12: #{tpu_custom_call.1} parent=1 // pred_region
      _
    $region13: #{tpu_custom_call.1} parent=1 // pred_fallthru
      _
    // Predicated region
    $region14: #{tpu_custom_call.1} parent=1 // pred_check
      _
    $region15: #{tpu_custom_call.1} parent=1 // pred_check_branch
      %17 = sbr.rel (0) target = $region17
    $region16: #{tpu_custom_call.1} parent=1 // pred_region
      _
    $region17: #{tpu_custom_call.1} parent=1 // pred_fallthru
      _
    %p18 = scmp.eq.s32.totalorder 0, 0
    // Predicated region
    $region18: #{tpu_custom_call.1} parent=1 // pred_check
      %p19 = pneg %p18
    $region19: #{tpu_custom_call.1} parent=1 // pred_check_branch
      %21 = sbr.rel (%p19) target = $region21
    $region20: #{tpu_custom_call.1} parent=1 // pred_region
      %vm22 = vcmask 7168
      %23 = vst.msk [vmem:[#allocation2] sm:$0xff] %vm22, 0.0
    $region21: #{tpu_custom_call.1} parent=1 // pred_fallthru
      _
    %v24 = vld [vmem:[%s0] sm:$0xff]
    %v25 = vld [vmem:[%s0 + $0x8] sm:$0xff]
    %v26 = vld [vmem:[%s1] sm:$0xff]
    %v27 = vld [vmem:[%s1 + $0x8] sm:$0xff]
    %28 = vxpose.xlu0.b32.start [1/16] %v24, 128
    %29 = vxpose.xlu0.b32.cont [2/16] %v25, 128
    %30 = vxpose.xlu0.b32.cont [3/16] 0.0, 128
    %31 = vxpose.xlu0.b32.cont [4/16] 0.0, 128
    %32 = vxpose.xlu0.b32.cont [5/16] 0.0, 128
    %33 = vxpose.xlu0.b32.cont [6/16] 0.0, 128
    %34 = vxpose.xlu0.b32.cont [7/16] 0.0, 128
    %35 = vxpose.xlu0.b32.cont [8/16] 0.0, 128
    %36 = vxpose.xlu0.b32.cont [9/16] 0.0, 128
    %37 = vxpose.xlu0.b32.cont [10/16] 0.0, 128
    %38 = vxpose.xlu0.b32.cont [11/16] 0.0, 128
    %39 = vxpose.xlu0.b32.cont [12/16] 0.0, 128
    %40 = vxpose.xlu0.b32.cont [13/16] 0.0, 128
    %41 = vxpose.xlu0.b32.cont [14/16] 0.0, 128
    %42 = vxpose.xlu0.b32.cont [15/16] 0.0, 128
    %43 = vxpose.xlu0.b32.end [16/16] 0.0, 128
    %v44 = vpop.trf.xlu0
    %v45 = vpop.trf.xlu0
    %v46 = vpop.trf.xlu0
    %v47 = vpop.trf.xlu0
    %v48 = vpop.trf.xlu0
    %v49 = vpop.trf.xlu0
    %v50 = vpop.trf.xlu0
    %v51 = vpop.trf.xlu0
    %v52 = vpop.trf.xlu0
    %v53 = vpop.trf.xlu0
    %v54 = vpop.trf.xlu0
    %v55 = vpop.trf.xlu0
    %v56 = vpop.trf.xlu0
    %v57 = vpop.trf.xlu0
    %v58 = vpop.trf.xlu0
    %v59 = vpop.trf.xlu0
    %vm60 = vcmask 130048
    %v62 = vsel %vm60, %v44, 0
    %64 = vmatprep.subr.mxu0 0.0
    %65 = vmatpush1.msra.mxu0 %v26
    %66 = vmatprep.subr.mxu0 0.0
    %67 = vmatpush1.msra.mxu0 %v27
    %68 = vmatprep.subr.mxu0 0.0
    %69 = vmatpush1.msra.mxu0 0.0
    %70 = vmatprep.subr.mxu0 0.0
    %71 = vmatpush1.msra.mxu0 0.0
    %72 = vmatprep.subr.mxu0 0.0
    %73 = vmatpush1.msra.mxu0 0.0
    %74 = vmatprep.subr.mxu0 0.0
    %75 = vmatpush1.msra.mxu0 0.0
    %76 = vmatprep.subr.mxu0 0.0
    %77 = vmatpush1.msra.mxu0 0.0
    %78 = vmatprep.subr.mxu0 0.0
    %79 = vmatpush1.msra.mxu0 0.0
    %80 = vmatprep.subr.mxu0 0.0
    %81 = vmatpush1.msra.mxu0 0.0
    %82 = vmatprep.subr.mxu0 0.0
    %83 = vmatpush1.msra.mxu0 0.0
    %84 = vmatprep.subr.mxu0 0.0
    %85 = vmatpush1.msra.mxu0 0.0
    %86 = vmatprep.subr.mxu0 0.0
    %87 = vmatpush1.msra.mxu0 0.0
    %88 = vmatprep.subr.mxu0 0.0
    %89 = vmatpush1.msra.mxu0 0.0
    %90 = vmatprep.subr.mxu0 0.0
    %91 = vmatpush1.msra.mxu0 0.0
    %92 = vmatprep.subr.mxu0 0.0
    %93 = vmatpush1.msra.mxu0 0.0
    %94 = vmatprep.subr.mxu0 0.0
    %95 = vmatpush1.msra.mxu0 0.0
    %96 = vmatprep.subr.mxu0 0.0
    %97 = vmatpush1.msra.mxu0 0.0
    %98 = vmatprep.subr.mxu0 0.0
    %99 = vmatpush1.msra.mxu0 0.0
    %100 = vmatprep.subr.mxu0 0.0
    %101 = vmatpush1.msra.mxu0 0.0
    %102 = vmatprep.subr.mxu0 0.0
    %103 = vmatpush1.msra.mxu0 0.0
    %104 = vmatprep.subr.mxu0 0.0
    %105 = vmatpush1.msra.mxu0 0.0
    %106 = vmatprep.subr.mxu0 0.0
    %107 = vmatpush1.msra.mxu0 0.0
    %108 = vmatprep.subr.mxu0 0.0
    %109 = vmatpush1.msra.mxu0 0.0
    %110 = vmatprep.subr.mxu0 0.0
    %111 = vmatpush1.msra.mxu0 0.0
    %112 = vmatprep.subr.mxu0 0.0
    %113 = vmatpush1.msra.mxu0 0.0
    %114 = vmatprep.subr.mxu0 0.0
    %115 = vmatpush1.msra.mxu0 0.0
    %116 = vmatprep.subr.mxu0 0.0
    %117 = vmatpush1.msra.mxu0 0.0
    %118 = vmatprep.subr.mxu0 0.0
    %119 = vmatpush1.msra.mxu0 0.0
    %120 = vmatprep.subr.mxu0 0.0
    %121 = vmatpush1.msra.mxu0 0.0
    %122 = vmatprep.subr.mxu0 0.0
    %123 = vmatpush1.msra.mxu0 0.0
    %124 = vmatprep.subr.mxu0 0.0
    %125 = vmatpush1.msra.mxu0 0.0
    %126 = vmatprep.subr.mxu0 0.0
    %127 = vmatpush1.msra.mxu0 0.0
    %128 = vmatprep.mubr.f32.mxu0 0.0
    %129 = vmatmul.mubr.f32.gmra.mrb[0].mxu0 %v62
    %v130 = vpop.f32.mrb[0].mxu0
    %v131 = vadd.f32 0.0, %v130
    %v132 = vpop.f32.mrb[0].mxu0
    %133 = vdwg.mxu0
    %v134 = vld [vmem:[%s2] sm:$0xff]
    %v135 = vld [vmem:[%s1] sm:$0x1]
    %v136 = vlaneseq
    %v137 = vshrl.u32 %v136, 7
    %v138 = vsub.s32 0, %v137
    %v139 = vrot.slane %v135, %v138
    %v140 = vmul.f32 %v134, %v139
    %v141 = vld [vmem:[#allocation2] sm:$0xff]
    %v142 = vmul.f32 %v140, %v131
    %v143 = vsel %vm60, %v142, 0.0
    %144 = vadd.xlane.f32.xlu0 %v143
    %v145 = vpop.xlane.xlu0 %144
    %v146 = vadd.f32 %v141, %v145
    %vm147 = vcmask 7168
    %148 = vst.msk [vmem:[#allocation2] sm:$0xff] %vm147, %v146
    // Predicated region
    $region22: #{tpu_custom_call.1} parent=1 // pred_check
      %p149 = pneg %p18
    $region23: #{tpu_custom_call.1} parent=1 // pred_check_branch
      %151 = sbr.rel (%p149) target = $region25
    $region24: #{tpu_custom_call.1} parent=1 // pred_region
      %v152 = vld [vmem:[#allocation2] sm:$0xff]
      %v153 = vld [vmem:[%s3] sm:$0xff]
      %155 = vset.pattern.permute.xlu0 0
      %156 = vperm.xlu0 %155, %v152
      %v157 = vpop.permute.xlu0 %156
      %v159 = vadd.f32 %v157, %v153
      %160 = vst.msk [vmem:[#allocation3] sm:$0xff] %vm60, %v159
    $region25: #{tpu_custom_call.1} parent=1 // pred_fallthru
      _
    // Predicated region
    $region26: #{tpu_custom_call.1} parent=1 // pred_check
      _
    $region27: #{tpu_custom_call.1} parent=1 // pred_check_branch
      %162 = sbr.rel (0) target = $region29
    $region28: #{tpu_custom_call.1} parent=1 // pred_region
      %s164 = ssub.s32 128, 128
      %165 = vsyncadd [#allocation4], %s164
      %s167 = sshll.u32 [#allocation3], 4
      %s168 = int_to_ptr.vmem [resolvable:$true] %s167
      %170 = dma.vmem_to_hbm [thread:$0]  %s168, 128, %s4, [#allocation4]
    $region29: #{tpu_custom_call.1} parent=1 // pred_fallthru
      _
    // Predicated region
    $region30: #{tpu_custom_call.1} parent=1 // pred_check
      _
    $region31: #{tpu_custom_call.1} parent=1 // pred_check_branch
      %172 = sbr.rel (0) target = $region33
    $region32: #{tpu_custom_call.1} parent=1 // pred_region
      %173 = dma.done [#allocation4], 128
    $region33: #{tpu_custom_call.1} parent=1 // pred_fallthru
      _
    %174 = vsyncpa [#allocation4], 1

</llo_original>
